<compile_context>
chip_gen: v6e
topology: v6e:2x2x1
jax: 0.10.0
libtpu: 0.0.40
codegen_flags: <defaults>
</compile_context>

<pallas_src>
import functools
import math

import jax
import jax.numpy as jnp
from jax.experimental import pallas as pl
from jax.experimental.pallas import tpu as pltpu


def _ce_loss_kernel(x_ref, t_ref, loss_ref, *, ignore_index, num_rows, block_rows):
    """One grid step processes a (block_rows, C) tile of rows.

    x_ref:    (tm, C) probabilities, native dtype (f32 or bf16)
    t_ref:    (tm, 1) int32 targets
    loss_ref: (tm, 1) f32 per-row NLL (0 for ignored / overhang rows)
    """
    i = pl.program_id(0)

    x = x_ref[...]                                            # (tm, C) native dtype
    t = t_ref[...]                                            # (tm, 1) int32

    # Mask rows past the true row count (last tile may overhang the array —
    # its data is unspecified) and rows whose target equals ignore_index.
    row = i * block_rows + jax.lax.broadcasted_iota(jnp.int32, (block_rows, 1), 0)
    valid = jnp.logical_and(row < num_rows, t != ignore_index)            # (tm, 1)

    # One-hot gather of x[r, t[r]]: a lane-only (1, C) iota broadcast against
    # the (tm, 1) targets (no materialized (tm, C) int32 iota, no dynamic
    # gather needed on TPU).
    col = jax.lax.broadcasted_iota(jnp.int32, (1, x.shape[-1]), 1)         # (1, C)
    sel = col == t                                                         # (tm, C)

    # Row reductions accumulate in f32 regardless of the input dtype
    # (summing bf16 probabilities over large C in bf16 would lose mantissa).
    sum_x = jnp.sum(x, axis=-1, keepdims=True, dtype=jnp.float32)          # (tm, 1)
    picked = jnp.sum(jnp.where(sel, x, jnp.zeros_like(x)),
                     axis=-1, keepdims=True, dtype=jnp.float32)            # (tm, 1)

    # logsumexp_c(log x) - log x[target] == log(sum_c x / x[target]).
    # Exact identity; slightly less underflow-robust than max-subtracted
    # logsumexp if every x in a row were denormal-small — irrelevant for
    # softmax-style probability inputs.
    loss = jnp.log(sum_x / picked)                                         # (tm, 1)

    # Ignored rows have picked == 0 -> inf/NaN above; the select drops them
    # before they can reach the output (select, no trap on TPU).
    loss_ref[...] = jnp.where(valid, loss, 0.0)


def _choose_block_rows(num_rows, num_classes, itemsize,
                       budget_bytes=24 << 20, cap=2048):
    """Largest multiple-of-8 row tile whose VMEM working set fits the budget.

    Per-row working set: double-buffered input block (2 * itemsize bytes/elem)
    plus ~2x f32-sized temporaries (select / compare intermediates), so the
    estimate stays valid on v7x's 64 MiB VMEM as well as v5e/v6e's 128 MiB.
    """
    per_row = num_classes * (2 * itemsize + 8)
    tm = budget_bytes // max(per_row, 1)
    tm = max(8, min(cap, (tm // 8) * 8))
    # No point in a block taller than the (8-rounded) array.
    tm = min(tm, ((num_rows + 7) // 8) * 8)
    return max(8, tm)


def ce_loss(output, target, *, ignore_index=-1, block_rows=None):
    """Pallas implementation of CELoss.forward.

    output: (N, *, C) float probabilities (f32 or bf16; kept in native dtype
            so bf16 inputs halve kernel DMA bytes)
    target: (N, *)    int targets (entries equal to ignore_index are skipped)
    Returns a scalar float32 loss (NaN if every target is ignored, matching
    PyTorch's 0/0 behavior for mean reduction).
    """
    x = jnp.asarray(output)
    t = jnp.asarray(target)

    C = x.shape[-1]
    M = int(math.prod(x.shape[:-1]))

    # Reshapes of contiguous arrays are free in XLA; dtype is kept as-is.
    x = x.reshape(M, C)
    t = t.reshape(M, 1).astype(jnp.int32)

    if block_rows is None:
        block_rows = _choose_block_rows(M, C, jnp.dtype(x.dtype).itemsize)
    tm = block_rows
    grid = (pl.cdiv(M, tm),)

    kernel = functools.partial(
        _ce_loss_kernel,
        ignore_index=ignore_index,
        num_rows=M,
        block_rows=tm,
    )

    loss_rows = pl.pallas_call(
        kernel,
        out_shape=jax.ShapeDtypeStruct((M, 1), jnp.float32),
        grid=grid,
        in_specs=[
            pl.BlockSpec((tm, C), lambda i: (i, 0)),
            pl.BlockSpec((tm, 1), lambda i: (i, 0)),
        ],
        out_specs=pl.BlockSpec((tm, 1), lambda i: (i, 0)),
        compiler_params=pltpu.CompilerParams(
            dimension_semantics=("parallel",),      # independent row tiles
            vmem_limit_bytes=48 * 1024 * 1024,      # <= 64 MiB (v7x), << 128 MiB (v5e/v6e)
        ),
    )(x, t)

    # Denominator from the original targets (no padded rows involved) — the
    # valid-count output stream was removed from the kernel entirely.
    n_valid = jnp.sum((t != ignore_index).astype(jnp.float32))
    # If every target is ignored this is 0/0 -> NaN, same as PyTorch mean.
    return jnp.sum(loss_rows) / n_valid


def _reference(output, target, ignore_index=-1):
    """Pure-JAX reference matching the PyTorch module exactly."""
    x = jnp.asarray(output).astype(jnp.float32)
    t = jnp.asarray(target)
    C = x.shape[-1]
    logx = jnp.log(x).reshape(-1, C)
    t = t.reshape(-1).astype(jnp.int32)
    lse = jax.scipy.special.logsumexp(logx, axis=-1)
    picked = jnp.take_along_axis(logx, jnp.clip(t, 0, C - 1)[:, None], axis=-1)[:, 0]
    valid = (t != ignore_index).astype(jnp.float32)
    return jnp.sum((lse - picked) * valid) / jnp.sum(valid)


if __name__ == "__main__":
    key = jax.random.PRNGKey(0)
    k1, k2 = jax.random.split(key)

    N, S, C = 2, 8, 32
    logits = jax.random.normal(k1, (N, S, C), dtype=jnp.float32)
    probs = jax.nn.softmax(logits, axis=-1)           # module expects probabilities
    tgt = jax.random.randint(k2, (N, S), 0, C, dtype=jnp.int32)
    tgt = tgt.at[0, 3].set(-1).at[1, 5].set(-1)       # exercise ignore_index

    loss = ce_loss(probs, tgt)
    loss = jax.block_until_ready(loss)

    ref = _reference(probs, tgt)
    assert jnp.allclose(loss, ref, atol=1e-5, rtol=1e-5), (loss, ref)

    print("KERNEL_OK")
</pallas_src>

<mosaic_0001>
module attributes {stable_mosaic.version = 11 : i64} {
  func.func @_ce_loss_kernel(%arg0: i32, %arg1: memref<16x32xf32, #tpu.memory_space<vmem>>, %arg2: memref<16x1xi32, #tpu.memory_space<vmem>>, %arg3: memref<16x1xf32, #tpu.memory_space<vmem>>) attributes {dimension_semantics = [#tpu.dimension_semantics<parallel>], iteration_bounds = array<i64: 1>, scalar_prefetch = 0 : i64, scratch_operands = 0 : i64, tpu.core_type = #tpu.core_type<tc>, window_params = [{transform_indices = @transform_0, window_bounds = array<i64: 16, 32>}, {transform_indices = @transform_1, window_bounds = array<i64: 16, 1>}, {transform_indices = @transform_2, window_bounds = array<i64: 16, 1>}]} {
    %c0 = arith.constant 0 : index
    %c0_0 = arith.constant 0 : index
    %0 = vector.load %arg1[%c0, %c0_0] : memref<16x32xf32, #tpu.memory_space<vmem>>, vector<16x32xf32>
    %c0_1 = arith.constant 0 : index
    %c0_2 = arith.constant 0 : index
    %1 = vector.load %arg2[%c0_1, %c0_2] : memref<16x1xi32, #tpu.memory_space<vmem>>, vector<16x1xi32>
    %c16_i32 = arith.constant 16 : i32
    %2 = arith.muli %arg0, %c16_i32 : i32
    %3 = tpu.iota {dimensions = array<i32: 0>} : vector<16x1xi32>
    %4 = vector.broadcast %2 : i32 to vector<16x1xi32>
    %5 = arith.addi %4, %3 : vector<16x1xi32>
    %c16_i32_3 = arith.constant 16 : i32
    %6 = vector.broadcast %c16_i32_3 : i32 to vector<16x1xi32>
    %7 = arith.cmpi slt, %5, %6 : vector<16x1xi32>
    %c-1_i32 = arith.constant -1 : i32
    %8 = vector.broadcast %c-1_i32 : i32 to vector<16x1xi32>
    %9 = arith.cmpi ne, %1, %8 : vector<16x1xi32>
    %10 = arith.andi %7, %9 : vector<16x1xi1>
    %11 = tpu.iota {dimensions = array<i32: 1>} : vector<1x32xi32>
    %12 = vector.broadcast %11 : vector<1x32xi32> to vector<16x32xi32>
    %13 = vector.broadcast %1 : vector<16x1xi32> to vector<16x32xi32>
    %14 = arith.cmpi eq, %12, %13 : vector<16x32xi32>
    %cst = arith.constant dense<0.000000e+00> : vector<16xf32>
    %15 = vector.multi_reduction <add>, %0, %cst [1] : vector<16x32xf32> to vector<16xf32>
    %16 = vector.shape_cast %15 : vector<16xf32> to vector<16x1xf32>
    %cst_4 = arith.constant 0.000000e+00 : f32
    %17 = vector.broadcast %cst_4 : f32 to vector<16x32xf32>
    %18 = arith.select %14, %0, %17 : vector<16x32xi1>, vector<16x32xf32>
    %cst_5 = arith.constant dense<0.000000e+00> : vector<16xf32>
    %19 = vector.multi_reduction <add>, %18, %cst_5 [1] : vector<16x32xf32> to vector<16xf32>
    %20 = vector.shape_cast %19 : vector<16xf32> to vector<16x1xf32>
    %21 = arith.divf %16, %20 : vector<16x1xf32>
    %22 = math.log %21 : vector<16x1xf32>
    %cst_6 = arith.constant 0.000000e+00 : f32
    %23 = vector.broadcast %cst_6 : f32 to vector<16x1xf32>
    %24 = arith.select %10, %22, %23 : vector<16x1xi1>, vector<16x1xf32>
    %c0_7 = arith.constant 0 : index
    %c0_8 = arith.constant 0 : index
    %25 = vector.load %arg3[%c0_7, %c0_8] : memref<16x1xf32, #tpu.memory_space<vmem>>, vector<16x1xf32>
    tpu.vector_store %arg3[%c0_7, %c0_8], %24 {strides = array<i32>} : memref<16x1xf32, #tpu.memory_space<vmem>>, vector<16x1xf32>,
    return
  }
  func.func @transform_0(%arg0: i32) -> (i32, i32) {
    %c0_i32 = arith.constant 0 : i32
    %c0_i32_0 = arith.constant 0 : i32
    return %arg0, %c0_i32 : i32, i32
  }
  func.func @transform_1(%arg0: i32) -> (i32, i32) {
    %c0_i32 = arith.constant 0 : i32
    %c0_i32_0 = arith.constant 0 : i32
    return %arg0, %c0_i32 : i32, i32
  }
  func.func @transform_2(%arg0: i32) -> (i32, i32) {
    %c0_i32 = arith.constant 0 : i32
    %c0_i32_0 = arith.constant 0 : i32
    return %arg0, %c0_i32 : i32, i32
  }
}

</mosaic_0001>

<llo_original>
// kernel: tpu_custom_call.1
$region0: #{tpu_custom_call.1}
  #allocation0 [shape = 'u32[]', space=smem, size = 0x4, offset = 0x4, fixed_abs, tag = 'smem constant byte address 0x4 - core index']
  #allocation1 [shape = 'u32[144,128]{1,0:T(1,128)}', space=vmem, size = 0x12000, scoped, tag = 'internal scratch']
  %s0 = inlined_call_operand.vmem [shape: f32[16,32], index: 0, kind: input, shape index: {}]
  %s1 = inlined_call_operand.vmem [shape: s32[16,1], index: 1, kind: input, shape index: {}]
  %s2 = inlined_call_operand.vmem [shape: f32[16,1], index: 2, kind: output, shape index: {}]
  %s3 = sld [smem:[#allocation0]]
  $region18: #{tpu_custom_call.1} parent=0
    _
  %s5 = ssub.s32 1, %s3
  %s6 = scalar_select 0, %s5, %s3
  // Predicated region
  $region2: #{tpu_custom_call.1} parent=0 // pred_check
    _
  $region3: #{tpu_custom_call.1} parent=0 // pred_check_branch
    %8 = sbr.rel (0) target = $region5
  $region4: #{tpu_custom_call.1} parent=0 // pred_region
    _
  $region5: #{tpu_custom_call.1} parent=0 // pred_fallthru
    _
  // Predicated region
  $region6: #{tpu_custom_call.1} parent=0 // pred_check
    _
  $region7: #{tpu_custom_call.1} parent=0 // pred_check_branch
    %10 = sbr.rel (0) target = $region9
  $region8: #{tpu_custom_call.1} parent=0 // pred_region
    _
  $region9: #{tpu_custom_call.1} parent=0 // pred_fallthru
    _
  %v11 = vld [vmem:[%s0] sm:$0xff]
  %v12 = vld [vmem:[%s0 + $0x8] sm:$0xff]
  %v13 = vld [vmem:[%s1] sm:$0xff]
  %v14 = vld [vmem:[%s1 + $0x8] sm:$0xff]
  %s15 = smul.u32 0, 16
  %v16 = vlaneseq
  %v17 = vshrl.u32 %v16, 7
  %v18 = vadd.s32 %v17, 8
  %v19 = vstv %s15
  %v20 = vadd.s32 %v19, %v17
  %v21 = vadd.s32 %v19, %v18
  %vm22 = vcmp.lt.s32.totalorder %v20, 16
  %vm23 = vcmp.lt.s32.totalorder %v21, 16
  %vm24 = vcmp.ne.s32.totalorder %v13, 4294967295
  %vm25 = vcmp.ne.s32.totalorder %v14, 4294967295
  %vm26 = vmand %vm22, %vm24
  %vm27 = vmand %vm23, %vm25
  %v28 = vlaneseq
  %v29 = vand.u32 %v28, 127
  %30 = vset.pattern.permute.xlu0 0
  %31 = vperm.xlu0 %30, %v13
  %v32 = vpop.permute.xlu0 %31
  %33 = vset.pattern.permute.xlu0 0
  %34 = vperm.xlu0 %33, %v14
  %v35 = vpop.permute.xlu0 %34
  %vm36 = vcmp.eq.s32.totalorder %v29, %v32
  %vm37 = vcmp.eq.s32.totalorder %v29, %v35
  %vm38 = vcmask 261120
  %v39 = vsel %vm38, %v11, 0.0
  %40 = vadd.xlane.f32.xlu0 %v39
  %v41 = vpop.xlane.xlu0 %40
  %v42 = vsel %vm38, %v12, 0.0
  %43 = vadd.xlane.f32.xlu0 %v42
  %v44 = vpop.xlane.xlu0 %43
  %v45 = vsel %vm36, %v11, 0.0
  %v46 = vsel %vm37, %v12, 0.0
  %v47 = vsel %vm38, %v45, 0.0
  %48 = vadd.xlane.f32.xlu0 %v47
  %v49 = vpop.xlane.xlu0 %48
  %v50 = vsel %vm38, %v46, 0.0
  %51 = vadd.xlane.f32.xlu0 %v50
  %v52 = vpop.xlane.xlu0 %51
  %v53 = vrcp.pop %v49
  %v54 = vmul.f32 %v41, %v53
  %v55 = vrcp.pop %v52
  %v56 = vmul.f32 %v44, %v55
  %v57 = vlog2.pop %v54
  %v58 = vmul.f32 %v57, 0.6931472
  %v59 = vlog2.pop %v56
  %v60 = vmul.f32 %v59, 0.6931472
  %v61 = vsel %vm26, %v58, 0.0
  %v62 = vsel %vm27, %v60, 0.0
  %vm63 = vcmask 7168
  %64 = vst.msk [vmem:[%s2] sm:$0xff] %vm63, %v61
  %65 = vst.msk [vmem:[%s2 + $0x8] sm:$0xff] %vm63, %v62
  // Predicated region
  $region10: #{tpu_custom_call.1} parent=0 // pred_check
    _
  $region11: #{tpu_custom_call.1} parent=0 // pred_check_branch
    %67 = sbr.rel (0) target = $region13
  $region12: #{tpu_custom_call.1} parent=0 // pred_region
    _
  $region13: #{tpu_custom_call.1} parent=0 // pred_fallthru
    _
  // Predicated region
  $region14: #{tpu_custom_call.1} parent=0 // pred_check
    _
  $region15: #{tpu_custom_call.1} parent=0 // pred_check_branch
    %69 = sbr.rel (0) target = $region17
  $region16: #{tpu_custom_call.1} parent=0 // pred_region
    _
  $region17: #{tpu_custom_call.1} parent=0 // pred_fallthru
    _

</llo_original>
